<compile_context>
chip_gen: v6e
topology: v6e:2x2x1
jax: 0.10.0
libtpu: 0.0.40
codegen_flags: <defaults>
</compile_context>

<pallas_src>
import functools
import math

import jax
import jax.numpy as jnp
from jax import lax
from jax.experimental import pallas as pl
from jax.experimental.pallas import tpu as pltpu


def _round_up(x, m):
    return ((x + m - 1) // m) * m


def _pick_tile(M, block):
    """Pick a square tile (multiple of 128) and padded size Mp (blk | Mp)."""
    mp_min = _round_up(M, 128)
    block = max(128, min(_round_up(block, 128), mp_min))
    best = None
    for cand in range(128, block + 1, 128):
        mp_c = _round_up(M, cand)
        steps = (mp_c // cand) ** 2
        # padded elementwise work + ~fixed per-grid-step overhead (element units)
        cost = mp_c * mp_c + 32768 * steps
        if best is None or cost < best[0]:
            best = (cost, cand, mp_c)
    _, blk, mp = best
    # Prefer >= 2 row tiles so the second TensorCore (v7x) / megacore has work.
    if mp // blk < 2 and mp >= 256 and (mp // 2) % 128 == 0:
        blk = mp // 2
    return blk, mp


def _denom_kernel(lab_r_ref, lab_c_ref, pos_r_ref, pos_c_ref, nsq_r_ref,
                  nsq_c_ref, inv_ref, acc_ref, *, m_valid):
    """inv_denom[r] = 1 / sum_c (weights*mask)[r, c]   (row sums, no symmetry)."""
    i = pl.program_id(0)                     # row tile  (parallel)
    j = pl.program_id(1)                     # col tile  (arbitrary / reduction)
    tm = pos_r_ref.shape[0]
    tn = pos_c_ref.shape[1]
    n_grp = tn // 128

    @pl.when(j == 0)
    def _():
        acc_ref[...] = jnp.zeros(acc_ref.shape, jnp.float32)

    row_g = i * tm + lax.broadcasted_iota(jnp.int32, (tm, 1), 0)
    col_g = j * tn + lax.broadcasted_iota(jnp.int32, (1, tn), 1)
    not_diag = row_g != col_g

    # RBF weight exponent = 2*gamma*<p_r,p_c> - gamma*||p_r||^2 - gamma*||p_c||^2
    # (positions pre-scaled by sqrt(2*gamma) in the wrapper; MXU cross term).
    cross = lax.dot_general(pos_r_ref[...], pos_c_ref[...],
                            (((1,), (0,)), ((), ())),
                            preferred_element_type=jnp.float32)
    w = jnp.exp(jnp.minimum(cross + nsq_r_ref[...] + nsq_c_ref[...], 0.0))

    # Padded columns have label -1 (never equal to a real class) -> excluded.
    keep = jnp.logical_and(lab_r_ref[...] == lab_c_ref[...], not_diag)
    fw = jnp.where(keep, w, 0.0)

    # Per-lane accumulation: fold the tn-wide tile into 128 lanes (VALU adds).
    part = fw[:, 0:128]
    for g in range(1, n_grp):
        part = part + fw[:, g * 128:(g + 1) * 128]
    acc_ref[...] += part

    @pl.when(j == pl.num_programs(1) - 1)
    def _():
        denom = jnp.sum(acc_ref[...], axis=1, keepdims=True)          # [tm, 1]
        valid = row_g < m_valid
        # Padded rows get 0 (not inf/NaN), so pass 2 never sees garbage.
        inv_ref[...] = jnp.where(valid, 1.0 / denom, 0.0)


def _wsp_main_kernel(z_r_ref, z_c_ref, lab_r_ref, lab_c_ref, pos_r_ref,
                     pos_c_ref, nsq_r_ref, side_c_ref, out_ref,
                     m_sc, l_sc, s1_sc, s2_sc,
                     *, inv_temp, inf_val, m_valid, n_orig, has_pad):
    i = pl.program_id(0)                     # row tile (parallel)
    j = pl.program_id(1)                     # col tile (arbitrary, online LSE)
    tm = z_r_ref.shape[0]
    tn = z_c_ref.shape[0]
    n_grp = tn // 128

    @pl.when(j == 0)
    def _():
        m_sc[...] = jnp.full(m_sc.shape, -1e30, jnp.float32)
        l_sc[...] = jnp.zeros(l_sc.shape, jnp.float32)
        s1_sc[...] = jnp.zeros(s1_sc.shape, jnp.float32)
        s2_sc[...] = jnp.zeros(s2_sc.shape, jnp.float32)

    nsq_c = side_c_ref[0:1, :]               # -gamma*||pos_c||^2
    invd = side_c_ref[1:2, :]                # 1/denominator (0 on padded cols)

    row_g = i * tm + lax.broadcasted_iota(jnp.int32, (tm, 1), 0)
    col_g = j * tn + lax.broadcasted_iota(jnp.int32, (1, tn), 1)
    diag = row_g == col_g

    # --- similarity logits: 'NT' MXU matmul with f32 accumulation ---
    sim = lax.dot_general(z_r_ref[...], z_c_ref[...],
                          (((1,), (1,)), ((), ())),
                          preferred_element_type=jnp.float32) * inv_temp
    if has_pad:
        sim = sim + side_c_ref[2:3, :]       # -1e9 bias on padded columns
    sim = jnp.where(diag, -inf_val, sim)

    # --- RBF weights times pre-inverted column denominator ---
    cross = lax.dot_general(pos_r_ref[...], pos_c_ref[...],
                            (((1,), (0,)), ((), ())),
                            preferred_element_type=jnp.float32)
    w = jnp.exp(jnp.minimum(cross + nsq_r_ref[...] + nsq_c, 0.0))
    keep = jnp.logical_and(lab_r_ref[...] == lab_c_ref[...],
                           jnp.logical_not(diag))
    fw = jnp.where(keep, w * invd, 0.0)

    # --- per-lane online softmax stats + weighted partial sums (VALU/EUP) ---
    m_tile = sim[:, 0:128]
    for g in range(1, n_grp):
        m_tile = jnp.maximum(m_tile, sim[:, g * 128:(g + 1) * 128])
    m_new = jnp.maximum(m_sc[...], m_tile)
    l_new = jnp.exp(m_sc[...] - m_new) * l_sc[...]
    for g in range(n_grp):
        l_new = l_new + jnp.exp(sim[:, g * 128:(g + 1) * 128] - m_new)
    m_sc[...] = m_new
    l_sc[...] = l_new

    sfw = sim * fw                           # masked entries: fw == 0 -> 0
    s1_t = sfw[:, 0:128]
    s2_t = fw[:, 0:128]
    for g in range(1, n_grp):
        s1_t = s1_t + sfw[:, g * 128:(g + 1) * 128]
        s2_t = s2_t + fw[:, g * 128:(g + 1) * 128]
    s1_sc[...] += s1_t
    s2_sc[...] += s2_t

    @pl.when(j == pl.num_programs(1) - 1)
    def _():
        # Single cross-lane combine per row tile.
        m_row = jnp.max(m_sc[...], axis=1, keepdims=True)              # [tm,1]
        l_row = jnp.sum(jnp.exp(m_sc[...] - m_row) * l_sc[...],
                        axis=1, keepdims=True)
        lse = m_row + jnp.log(l_row)
        s1 = jnp.sum(s1_sc[...], axis=1, keepdims=True)
        s2 = jnp.sum(s2_sc[...], axis=1, keepdims=True)
        valid_row = row_g < m_valid
        # sum_c (sim - lse) * fw  ==  s1 - lse * s2   (per row)
        contrib = jnp.where(valid_row, s1 - lse * s2, 0.0)
        out_ref[...] = (-1.0 / n_orig) * jnp.sum(contrib, axis=0, keepdims=True)


def wsp_contrastive_loss(z_i, z_j, labels, z_pos, *, num_classes=None,
                         temperature=0.1, sigma=1.0, block=512,
                         matmul_dtype=jnp.bfloat16):
    """Pallas implementation of WSPContrastiveLoss.forward (kernel='rbf').

    `num_classes` is accepted for API parity but unused: one_hot @ one_hot.T
    is algebraically a label-equality compare, done as an int32 VPU compare.
    """
    del num_classes
    N, D = z_i.shape
    M = 2 * N
    gamma = 1.0 / (2.0 * sigma ** 2)
    inv_temp = 1.0 / temperature
    inf_val = 1e8

    blk, Mp = _pick_tile(M, block)
    tm = tn = blk
    grid_rows = grid_cols = Mp // blk
    Dp = _round_up(D, 128)

    # ---- plain-JAX glue: concat, L2-normalize, pre-scale, pad ----------------
    z = jnp.concatenate([z_i, z_j], axis=0).astype(jnp.float32)            # [M, D]
    z = z / jnp.maximum(jnp.sqrt(jnp.sum(z * z, axis=-1, keepdims=True)), 1e-12)
    z = jnp.pad(z, ((0, Mp - M), (0, Dp - D))).astype(matmul_dtype)        # [Mp, Dp]

    labs = jnp.concatenate([labels, labels], axis=0).astype(jnp.int32)
    labs = jnp.pad(labs, (0, Mp - M), constant_values=-1)                  # -1 never matches
    lab_row = labs.reshape(Mp, 1)
    lab_col = labs.reshape(1, Mp)

    pos = jnp.reshape(z_pos.astype(jnp.float32), (N, -1))
    pos = jnp.concatenate([pos, pos], axis=0)                              # [M, P]
    P = pos.shape[1]
    Pp = _round_up(max(P, 8), 8)
    nsq = -gamma * jnp.sum(pos * pos, axis=1)                              # [M]
    pos_s = pos * math.sqrt(2.0 * gamma)        # fold 2*gamma into the MXU cross term
    pos_row = jnp.pad(pos_s, ((0, Mp - M), (0, Pp - P)))                   # [Mp, Pp]
    pos_col = pos_row.T                                                    # [Pp, Mp]
    nsq = jnp.pad(nsq, (0, Mp - M))
    nsq_r = nsq.reshape(Mp, 1)
    nsq_c = nsq.reshape(1, Mp)

    has_pad = Mp > M
    col_bias = jnp.where(jnp.arange(Mp) < M, 0.0, -1e9)
    col_bias = col_bias.astype(jnp.float32).reshape(1, Mp)

    # ---- pass 1: 1 / final_weights row sums (no MxM temporary) ---------------
    inv_denom = pl.pallas_call(
        functools.partial(_denom_kernel, m_valid=M),
        out_shape=jax.ShapeDtypeStruct((Mp, 1), jnp.float32),
        grid_spec=pltpu.PrefetchScalarGridSpec(
            num_scalar_prefetch=0,
            grid=(grid_rows, grid_cols),
            in_specs=[
                pl.BlockSpec((tm, 1), lambda i, j: (i, 0)),    # row labels (int32)
                pl.BlockSpec((1, tn), lambda i, j: (0, j)),    # col labels (int32)
                pl.BlockSpec((tm, Pp), lambda i, j: (i, 0)),   # row positions
                pl.BlockSpec((Pp, tn), lambda i, j: (0, j)),   # col positions
                pl.BlockSpec((tm, 1), lambda i, j: (i, 0)),    # -gamma*||pos_r||^2
                pl.BlockSpec((1, tn), lambda i, j: (0, j)),    # -gamma*||pos_c||^2
            ],
            out_specs=pl.BlockSpec((tm, 1), lambda i, j: (i, 0)),
            scratch_shapes=[pltpu.VMEM((tm, 128), jnp.float32)],
        ),
        compiler_params=pltpu.CompilerParams(
            dimension_semantics=("parallel", "arbitrary"),
            vmem_limit_bytes=32 * 1024 * 1024),
    )(lab_row, lab_col, pos_row, pos_col, nsq_r, nsq_c)

    # Stack the per-column f32 side vectors -> one DMA per grid step in pass 2.
    side_c = jnp.concatenate([nsq_c, inv_denom.reshape(1, Mp), col_bias], axis=0)

    # ---- pass 2: tiled logits + online log-softmax + weighted reduction ------
    itemsize = jnp.dtype(matmul_dtype).itemsize
    cost = pl.CostEstimate(
        flops=int(2.0 * Mp * Mp * (Dp + Pp) + 24.0 * Mp * Mp),
        transcendentals=int(2 * Mp * Mp),
        bytes_accessed=int(Mp * Dp * itemsize * (grid_rows + 1) + 32 * Mp),
    )
    main_kernel = functools.partial(
        _wsp_main_kernel, inv_temp=inv_temp, inf_val=inf_val, m_valid=M,
        n_orig=N, has_pad=has_pad)

    partials = pl.pallas_call(
        main_kernel,
        out_shape=jax.ShapeDtypeStruct((grid_rows, 1, 1), jnp.float32),
        grid_spec=pltpu.PrefetchScalarGridSpec(
            num_scalar_prefetch=0,
            grid=(grid_rows, grid_cols),
            in_specs=[
                pl.BlockSpec((tm, Dp), lambda i, j: (i, 0)),   # Z row block
                pl.BlockSpec((tn, Dp), lambda i, j: (j, 0)),   # Z col block
                pl.BlockSpec((tm, 1), lambda i, j: (i, 0)),    # row labels (int32)
                pl.BlockSpec((1, tn), lambda i, j: (0, j)),    # col labels (int32)
                pl.BlockSpec((tm, Pp), lambda i, j: (i, 0)),   # row positions
                pl.BlockSpec((Pp, tn), lambda i, j: (0, j)),   # col positions
                pl.BlockSpec((tm, 1), lambda i, j: (i, 0)),    # -gamma*||pos_r||^2
                pl.BlockSpec((3, tn), lambda i, j: (0, j)),    # [nsq_c; 1/denom; bias]
            ],
            out_specs=pl.BlockSpec((None, 1, 1), lambda i, j: (i, 0, 0)),
            scratch_shapes=[
                pltpu.VMEM((tm, 128), jnp.float32),   # per-lane running max
                pltpu.VMEM((tm, 128), jnp.float32),   # per-lane running sum-exp
                pltpu.VMEM((tm, 128), jnp.float32),   # per-lane sum sim*fw
                pltpu.VMEM((tm, 128), jnp.float32),   # per-lane sum fw
            ],
        ),
        compiler_params=pltpu.CompilerParams(
            dimension_semantics=("parallel", "arbitrary"),
            vmem_limit_bytes=48 * 1024 * 1024),
        cost_estimate=cost,
    )(z, z, lab_row, lab_col, pos_row, pos_col, nsq_r, side_c)

    return jnp.sum(partials)


def _reference_loss(z_i, z_j, labels, z_pos, *, num_classes, temperature=0.1,
                    sigma=1.0, round_embeddings_to_bf16=False):
    """Pure-JAX reference mirroring the PyTorch forward exactly."""
    N = z_i.shape[0]
    INF = 1e8
    gamma = 1.0 / (2.0 * sigma ** 2)
    zi = z_i / jnp.maximum(jnp.linalg.norm(z_i, axis=-1, keepdims=True), 1e-12)
    zj = z_j / jnp.maximum(jnp.linalg.norm(z_j, axis=-1, keepdims=True), 1e-12)
    if round_embeddings_to_bf16:
        zi = zi.astype(jnp.bfloat16).astype(jnp.float32)
        zj = zj.astype(jnp.bfloat16).astype(jnp.float32)
    sim_zii = zi @ zi.T / temperature - INF * jnp.eye(N)
    sim_zjj = zj @ zj.T / temperature - INF * jnp.eye(N)
    sim_zij = zi @ zj.T / temperature
    labs = jax.nn.one_hot(labels, num_classes, dtype=jnp.float32)
    L = jnp.concatenate([labs, labs], axis=0)
    mask = (L @ L.T) * (1.0 - jnp.eye(2 * N))
    pos = jnp.reshape(z_pos.astype(jnp.float32), (N, -1))
    pos = jnp.concatenate([pos, pos], axis=0)
    d2 = jnp.sum((pos[:, None, :] - pos[None, :, :]) ** 2, axis=-1)
    weights = jnp.exp(-gamma * d2) * (1.0 - jnp.eye(2 * N))
    fw = weights * mask
    fw = fw / jnp.sum(fw, axis=1)[None, :]
    sim_Z = jnp.concatenate(
        [jnp.concatenate([sim_zii, sim_zij], axis=1),
         jnp.concatenate([sim_zij.T, sim_zjj], axis=1)], axis=0)
    log_sm = jax.nn.log_softmax(sim_Z, axis=1)
    return (-1.0 / N) * jnp.sum(log_sm * fw)


if __name__ == "__main__":
    key = jax.random.PRNGKey(0)

    # ---- test 1: tiny shapes, f32 MXU feed, tight check vs reference ----
    k1, k2, k3, key = jax.random.split(key, 4)
    N, D, C = 8, 32, 4
    z_i = jax.random.normal(k1, (N, D), dtype=jnp.float32)
    z_j = jax.random.normal(k2, (N, D), dtype=jnp.float32)
    labels = jnp.array([0, 1, 2, 3, 0, 1, 2, 3], dtype=jnp.int32)
    z_pos = jax.random.uniform(k3, (N, 1), dtype=jnp.float32) * 10.0

    loss = jax.block_until_ready(wsp_contrastive_loss(
        z_i, z_j, labels, z_pos, num_classes=C, matmul_dtype=jnp.float32))
    ref = jax.block_until_ready(_reference_loss(
        z_i, z_j, labels, z_pos, num_classes=C))
    assert jnp.isfinite(loss), "non-finite loss (test 1)"
    assert jnp.allclose(loss, ref, rtol=5e-4, atol=5e-4), (loss, ref)

    # ---- test 2: larger shapes (padding, default tile heuristic) ----
    k1, k2, k3, k4, key = jax.random.split(key, 5)
    N2, D2, C2 = 150, 100, 5
    z_i2 = jax.random.normal(k1, (N2, D2), dtype=jnp.float32)
    z_j2 = jax.random.normal(k2, (N2, D2), dtype=jnp.float32)
    labels2 = jax.random.randint(k3, (N2,), 0, C2, dtype=jnp.int32)
    z_pos2 = jax.random.uniform(k4, (N2, 3), dtype=jnp.float32) * 5.0

    ref2 = jax.block_until_ready(_reference_loss(
        z_i2, z_j2, labels2, z_pos2, num_classes=C2))

    loss2 = jax.block_until_ready(wsp_contrastive_loss(
        z_i2, z_j2, labels2, z_pos2, num_classes=C2, matmul_dtype=jnp.float32))
    assert jnp.isfinite(loss2), "non-finite loss (test 2, f32)"
    assert jnp.allclose(loss2, ref2, rtol=5e-4, atol=5e-4), (loss2, ref2)

    # Forced small tile -> 3x3 grid: exercises the multi-tile online softmax
    # and cross-tile per-lane accumulators explicitly.
    loss2m = jax.block_until_ready(wsp_contrastive_loss(
        z_i2, z_j2, labels2, z_pos2, num_classes=C2, block=128,
        matmul_dtype=jnp.float32))
    assert jnp.isfinite(loss2m), "non-finite loss (test 2, multi-tile)"
    assert jnp.allclose(loss2m, ref2, rtol=5e-4, atol=5e-4), (loss2m, ref2)

    # bf16-fed MXU path (default): compare against a reference that rounds the
    # normalized embeddings identically, so only accumulation order differs.
    loss2b = jax.block_until_ready(wsp_contrastive_loss(
        z_i2, z_j2, labels2, z_pos2, num_classes=C2,
        matmul_dtype=jnp.bfloat16))
    ref2b = jax.block_until_ready(_reference_loss(
        z_i2, z_j2, labels2, z_pos2, num_classes=C2,
        round_embeddings_to_bf16=True))
    assert jnp.isfinite(loss2b), "non-finite loss (test 2, bf16)"
    assert jnp.allclose(loss2b, ref2b, rtol=1e-3, atol=1e-3), (loss2b, ref2b)

    # TODO(synk): return_logits=True path (sim_zij, correct_pairs) and the
    # 'laplacian'/'discrete'/'distance' weighting kernels are not implemented;
    # only the default rbf/forward-loss path is covered.
    print("KERNEL_OK")
</pallas_src>

<mosaic_0001>
module attributes {stable_mosaic.version = 11 : i64} {
  func.func @_denom_kernel(%arg0: i32, %arg1: i32, %arg2: memref<128x1xi32, #tpu.memory_space<vmem>>, %arg3: memref<1x128xi32, #tpu.memory_space<vmem>>, %arg4: memref<128x8xf32, #tpu.memory_space<vmem>>, %arg5: memref<8x128xf32, #tpu.memory_space<vmem>>, %arg6: memref<128x1xf32, #tpu.memory_space<vmem>>, %arg7: memref<1x128xf32, #tpu.memory_space<vmem>>, %arg8: memref<128x1xf32, #tpu.memory_space<vmem>>, %arg9: memref<128x128xf32, #tpu.memory_space<vmem>>) attributes {dimension_semantics = [#tpu.dimension_semantics<parallel>, #tpu.dimension_semantics<arbitrary>], iteration_bounds = array<i64: 1, 1>, scalar_prefetch = 0 : i64, scratch_operands = 1 : i64, tpu.core_type = #tpu.core_type<tc>, window_params = [{transform_indices = @transform_0, window_bounds = array<i64: 128, 1>}, {transform_indices = @transform_1, window_bounds = array<i64: 1, 128>}, {transform_indices = @transform_2, window_bounds = array<i64: 128, 8>}, {transform_indices = @transform_3, window_bounds = array<i64: 8, 128>}, {transform_indices = @transform_4, window_bounds = array<i64: 128, 1>}, {transform_indices = @transform_5, window_bounds = array<i64: 1, 128>}, {transform_indices = @transform_6, window_bounds = array<i64: 128, 1>}]} {
    %c0_i32 = arith.constant 0 : i32
    %0 = arith.cmpi eq, %arg1, %c0_i32 : i32
    %1 = arith.extui %0 : i1 to i32
    %c0_i32_0 = arith.constant 0 : i32
    %2 = arith.cmpi ne, %1, %c0_i32_0 : i32
    scf.if %2 {
      %cst_21 = arith.constant 0.000000e+00 : f32
      %40 = vector.broadcast %cst_21 : f32 to vector<128x128xf32>
      %c0_22 = arith.constant 0 : index
      %c0_23 = arith.constant 0 : index
      %41 = vector.load %arg9[%c0_22, %c0_23] : memref<128x128xf32, #tpu.memory_space<vmem>>, vector<128x128xf32>
      tpu.vector_store %arg9[%c0_22, %c0_23], %40 {strides = array<i32>} : memref<128x128xf32, #tpu.memory_space<vmem>>, vector<128x128xf32>,
    } else {
    }
    %c128_i32 = arith.constant 128 : i32
    %3 = arith.muli %arg0, %c128_i32 : i32
    %4 = tpu.iota {dimensions = array<i32: 0>} : vector<128x1xi32>
    %5 = vector.broadcast %3 : i32 to vector<128x1xi32>
    %6 = arith.addi %5, %4 : vector<128x1xi32>
    %c128_i32_1 = arith.constant 128 : i32
    %7 = arith.muli %arg1, %c128_i32_1 : i32
    %8 = tpu.iota {dimensions = array<i32: 1>} : vector<1x128xi32>
    %9 = vector.broadcast %7 : i32 to vector<1x128xi32>
    %10 = arith.addi %9, %8 : vector<1x128xi32>
    %11 = vector.broadcast %6 : vector<128x1xi32> to vector<128x128xi32>
    %12 = vector.broadcast %10 : vector<1x128xi32> to vector<128x128xi32>
    %13 = arith.cmpi ne, %11, %12 : vector<128x128xi32>
    %c0 = arith.constant 0 : index
    %c0_2 = arith.constant 0 : index
    %14 = vector.load %arg4[%c0, %c0_2] : memref<128x8xf32, #tpu.memory_space<vmem>>, vector<128x8xf32>
    %c0_3 = arith.constant 0 : index
    %c0_4 = arith.constant 0 : index
    %15 = vector.load %arg5[%c0_3, %c0_4] : memref<8x128xf32, #tpu.memory_space<vmem>>, vector<8x128xf32>
    %cst = arith.constant dense<0.000000e+00> : vector<128x128xf32>
    %16 = tpu.matmul %14, %15, %cst {dimension_numbers = #tpu.dot_dimension_numbers<[1], [0], [0], [1], [0, 0, 1, 1], [], []>} : vector<128x8xf32>, vector<8x128xf32>, vector<128x128xf32> -> vector<128x128xf32>
    %c0_5 = arith.constant 0 : index
    %c0_6 = arith.constant 0 : index
    %17 = vector.load %arg6[%c0_5, %c0_6] : memref<128x1xf32, #tpu.memory_space<vmem>>, vector<128x1xf32>
    %18 = vector.broadcast %17 : vector<128x1xf32> to vector<128x128xf32>
    %19 = arith.addf %16, %18 : vector<128x128xf32>
    %c0_7 = arith.constant 0 : index
    %c0_8 = arith.constant 0 : index
    %20 = vector.load %arg7[%c0_7, %c0_8] : memref<1x128xf32, #tpu.memory_space<vmem>>, vector<1x128xf32>
    %21 = vector.broadcast %20 : vector<1x128xf32> to vector<128x128xf32>
    %22 = arith.addf %19, %21 : vector<128x128xf32>
    %cst_9 = arith.constant 0.000000e+00 : f32
    %23 = vector.broadcast %cst_9 : f32 to vector<128x128xf32>
    %24 = arith.minimumf %22, %23 : vector<128x128xf32>
    %25 = math.exp %24 : vector<128x128xf32>
    %c0_10 = arith.constant 0 : index
    %c0_11 = arith.constant 0 : index
    %26 = vector.load %arg2[%c0_10, %c0_11] : memref<128x1xi32, #tpu.memory_space<vmem>>, vector<128x1xi32>
    %c0_12 = arith.constant 0 : index
    %c0_13 = arith.constant 0 : index
    %27 = vector.load %arg3[%c0_12, %c0_13] : memref<1x128xi32, #tpu.memory_space<vmem>>, vector<1x128xi32>
    %28 = vector.broadcast %26 : vector<128x1xi32> to vector<128x128xi32>
    %29 = vector.broadcast %27 : vector<1x128xi32> to vector<128x128xi32>
    %30 = arith.cmpi eq, %28, %29 : vector<128x128xi32>
    %31 = arith.andi %30, %13 : vector<128x128xi1>
    %cst_14 = arith.constant 0.000000e+00 : f32
    %32 = vector.broadcast %cst_14 : f32 to vector<128x128xf32>
    %33 = arith.select %31, %25, %32 : vector<128x128xi1>, vector<128x128xf32>
    %c0_15 = arith.constant 0 : index
    %c0_16 = arith.constant 0 : index
    %34 = vector.load %arg9[%c0_15, %c0_16] : memref<128x128xf32, #tpu.memory_space<vmem>>, vector<128x128xf32>
    %35 = arith.addf %34, %33 : vector<128x128xf32>
    %c0_17 = arith.constant 0 : index
    %c0_18 = arith.constant 0 : index
    %36 = vector.load %arg9[%c0_17, %c0_18] : memref<128x128xf32, #tpu.memory_space<vmem>>, vector<128x128xf32>
    tpu.vector_store %arg9[%c0_17, %c0_18], %35 {strides = array<i32>} : memref<128x128xf32, #tpu.memory_space<vmem>>, vector<128x128xf32>,
    %c0_i32_19 = arith.constant 0 : i32
    %37 = arith.cmpi eq, %arg1, %c0_i32_19 : i32
    %38 = arith.extui %37 : i1 to i32
    %c0_i32_20 = arith.constant 0 : i32
    %39 = arith.cmpi ne, %38, %c0_i32_20 : i32
    scf.if %39 {
      %c0_21 = arith.constant 0 : index
      %c0_22 = arith.constant 0 : index
      %40 = vector.load %arg9[%c0_21, %c0_22] : memref<128x128xf32, #tpu.memory_space<vmem>>, vector<128x128xf32>
      %cst_23 = arith.constant dense<0.000000e+00> : vector<128xf32>
      %41 = vector.multi_reduction <add>, %40, %cst_23 [1] : vector<128x128xf32> to vector<128xf32>
      %42 = vector.shape_cast %41 : vector<128xf32> to vector<128x1xf32>
      %c16_i32 = arith.constant 16 : i32
      %43 = vector.broadcast %c16_i32 : i32 to vector<128x1xi32>
      %44 = arith.cmpi slt, %6, %43 : vector<128x1xi32>
      %cst_24 = arith.constant 1.000000e+00 : f32
      %45 = vector.broadcast %cst_24 : f32 to vector<128x1xf32>
      %46 = arith.divf %45, %42 : vector<128x1xf32>
      %cst_25 = arith.constant 0.000000e+00 : f32
      %47 = vector.broadcast %cst_25 : f32 to vector<128x1xf32>
      %48 = arith.select %44, %46, %47 : vector<128x1xi1>, vector<128x1xf32>
      %c0_26 = arith.constant 0 : index
      %c0_27 = arith.constant 0 : index
      %49 = vector.load %arg8[%c0_26, %c0_27] : memref<128x1xf32, #tpu.memory_space<vmem>>, vector<128x1xf32>
      tpu.vector_store %arg8[%c0_26, %c0_27], %48 {strides = array<i32>} : memref<128x1xf32, #tpu.memory_space<vmem>>, vector<128x1xf32>,
    } else {
    }
    return
  }
  func.func @transform_0(%arg0: i32, %arg1: i32) -> (i32, i32) {
    %c0_i32 = arith.constant 0 : i32
    %c0_i32_0 = arith.constant 0 : i32
    return %arg0, %c0_i32 : i32, i32
  }
  func.func @transform_1(%arg0: i32, %arg1: i32) -> (i32, i32) {
    %c0_i32 = arith.constant 0 : i32
    %c0_i32_0 = arith.constant 0 : i32
    return %c0_i32, %arg1 : i32, i32
  }
  func.func @transform_2(%arg0: i32, %arg1: i32) -> (i32, i32) {
    %c0_i32 = arith.constant 0 : i32
    %c0_i32_0 = arith.constant 0 : i32
    return %arg0, %c0_i32 : i32, i32
  }
  func.func @transform_3(%arg0: i32, %arg1: i32) -> (i32, i32) {
    %c0_i32 = arith.constant 0 : i32
    %c0_i32_0 = arith.constant 0 : i32
    return %c0_i32, %arg1 : i32, i32
  }
  func.func @transform_4(%arg0: i32, %arg1: i32) -> (i32, i32) {
    %c0_i32 = arith.constant 0 : i32
    %c0_i32_0 = arith.constant 0 : i32
    return %arg0, %c0_i32 : i32, i32
  }
  func.func @transform_5(%arg0: i32, %arg1: i32) -> (i32, i32) {
    %c0_i32 = arith.constant 0 : i32
    %c0_i32_0 = arith.constant 0 : i32
    return %c0_i32, %arg1 : i32, i32
  }
  func.func @transform_6(%arg0: i32, %arg1: i32) -> (i32, i32) {
    %c0_i32 = arith.constant 0 : i32
    %c0_i32_0 = arith.constant 0 : i32
    return %arg0, %c0_i32 : i32, i32
  }
}

</mosaic_0001>

<llo_original>
// kernel: tpu_custom_call.1
$region0: #{tpu_custom_call.1}
  #allocation0 [shape = 'u32[]', space=smem, size = 0x4, offset = 0x4, fixed_abs, tag = 'smem constant byte address 0x4 - core index']
  #allocation1 [shape = 'u32[144,128]{1,0:T(1,128)}', space=vmem, size = 0x12000, scoped, tag = 'internal scratch']
  #allocation2 [shape = 'f32[128,128]{1,0:T(8,128)}', space=vmem, size = 0x10000, scoped, tag = 'scratch operand']
  %s0 = inlined_call_operand.vmem [shape: s32[128,1], index: 0, kind: input, shape index: {}]
  %s1 = inlined_call_operand.vmem [shape: s32[1,128], index: 1, kind: input, shape index: {}]
  %s2 = inlined_call_operand.vmem [shape: f32[128,8], index: 2, kind: input, shape index: {}]
  %s3 = inlined_call_operand.vmem [shape: f32[8,128], index: 3, kind: input, shape index: {}]
  %s4 = inlined_call_operand.vmem [shape: f32[128,1], index: 4, kind: input, shape index: {}]
  %s5 = inlined_call_operand.vmem [shape: f32[1,128], index: 5, kind: input, shape index: {}]
  %s6 = inlined_call_operand.vmem [shape: f32[128,1], index: 6, kind: output, shape index: {}]
  %s7 = sld [smem:[#allocation0]]
  $region42: #{tpu_custom_call.1} parent=0
    _
  %s9 = ssub.s32 1, %s7
  %s10 = scalar_select 0, %s9, %s7
  // Predicated region
  $region2: #{tpu_custom_call.1} parent=0 // pred_check
    _
  $region3: #{tpu_custom_call.1} parent=0 // pred_check_branch
    %12 = sbr.rel (0) target = $region5
  $region4: #{tpu_custom_call.1} parent=0 // pred_region
    _
  $region5: #{tpu_custom_call.1} parent=0 // pred_fallthru
    _
  // Predicated region
  $region6: #{tpu_custom_call.1} parent=0 // pred_check
    _
  $region7: #{tpu_custom_call.1} parent=0 // pred_check_branch
    %14 = sbr.rel (0) target = $region9
  $region8: #{tpu_custom_call.1} parent=0 // pred_region
    _
  $region9: #{tpu_custom_call.1} parent=0 // pred_fallthru
    _
  // Predicated region
  $region10: #{tpu_custom_call.1} parent=0 // pred_check
    _
  $region11: #{tpu_custom_call.1} parent=0 // pred_check_branch
    %16 = sbr.rel (0) target = $region13
  $region12: #{tpu_custom_call.1} parent=0 // pred_region
    _
  $region13: #{tpu_custom_call.1} parent=0 // pred_fallthru
    _
  // Predicated region
  $region14: #{tpu_custom_call.1} parent=0 // pred_check
    _
  $region15: #{tpu_custom_call.1} parent=0 // pred_check_branch
    %18 = sbr.rel (0) target = $region17
  $region16: #{tpu_custom_call.1} parent=0 // pred_region
    _
  $region17: #{tpu_custom_call.1} parent=0 // pred_fallthru
    _
  // Predicated region
  $region18: #{tpu_custom_call.1} parent=0 // pred_check
    _
  $region19: #{tpu_custom_call.1} parent=0 // pred_check_branch
    %20 = sbr.rel (0) target = $region21
  $region20: #{tpu_custom_call.1} parent=0 // pred_region
    _
  $region21: #{tpu_custom_call.1} parent=0 // pred_fallthru
    _
  // Predicated region
  $region22: #{tpu_custom_call.1} parent=0 // pred_check
    _
  $region23: #{tpu_custom_call.1} parent=0 // pred_check_branch
    %22 = sbr.rel (0) target = $region25
  $region24: #{tpu_custom_call.1} parent=0 // pred_region
    _
  $region25: #{tpu_custom_call.1} parent=0 // pred_fallthru
    _
  %p23 = scmp.eq.s32.totalorder 0, 0
  // Predicated region
  $region26: #{tpu_custom_call.1} parent=0 // pred_check
    %p24 = pneg %p23
  $region27: #{tpu_custom_call.1} parent=0 // pred_check_branch
    %26 = sbr.rel (%p24) target = $region29
  $region28: #{tpu_custom_call.1} parent=0 // pred_region
    %27 = vst [vmem:[#allocation2] sm:$0xff] 0.0
    %28 = vst [vmem:[#allocation2 + $0x8] sm:$0xff] 0.0
    %29 = vst [vmem:[#allocation2 + $0x10] sm:$0xff] 0.0
    %30 = vst [vmem:[#allocation2 + $0x18] sm:$0xff] 0.0
    %31 = vst [vmem:[#allocation2 + $0x20] sm:$0xff] 0.0
    %32 = vst [vmem:[#allocation2 + $0x28] sm:$0xff] 0.0
    %33 = vst [vmem:[#allocation2 + $0x30] sm:$0xff] 0.0
    %34 = vst [vmem:[#allocation2 + $0x38] sm:$0xff] 0.0
    %35 = vst [vmem:[#allocation2 + $0x40] sm:$0xff] 0.0
    %36 = vst [vmem:[#allocation2 + $0x48] sm:$0xff] 0.0
    %37 = vst [vmem:[#allocation2 + $0x50] sm:$0xff] 0.0
    %38 = vst [vmem:[#allocation2 + $0x58] sm:$0xff] 0.0
    %39 = vst [vmem:[#allocation2 + $0x60] sm:$0xff] 0.0
    %40 = vst [vmem:[#allocation2 + $0x68] sm:$0xff] 0.0
    %41 = vst [vmem:[#allocation2 + $0x70] sm:$0xff] 0.0
    %42 = vst [vmem:[#allocation2 + $0x78] sm:$0xff] 0.0
  $region29: #{tpu_custom_call.1} parent=0 // pred_fallthru
    _
  %s43 = smul.u32 0, 128
  %v44 = vlaneseq
  %v45 = vshrl.u32 %v44, 7
  %v46 = vadd.s32 %v45, 8
  %v47 = vadd.s32 %v45, 16
  %v48 = vadd.s32 %v45, 24
  %v49 = vadd.s32 %v45, 32
  %v50 = vadd.s32 %v45, 40
  %v51 = vadd.s32 %v45, 48
  %v52 = vadd.s32 %v45, 56
  %v53 = vadd.s32 %v45, 64
  %v54 = vadd.s32 %v45, 72
  %v55 = vadd.s32 %v45, 80
  %v56 = vadd.s32 %v45, 88
  %v57 = vadd.s32 %v45, 96
  %v58 = vadd.s32 %v45, 104
  %v59 = vadd.s32 %v45, 112
  %v60 = vadd.s32 %v45, 120
  %v61 = vstv %s43
  %v62 = vadd.s32 %v61, %v45
  %v63 = vadd.s32 %v61, %v46
  %v64 = vadd.s32 %v61, %v47
  %v65 = vadd.s32 %v61, %v48
  %v66 = vadd.s32 %v61, %v49
  %v67 = vadd.s32 %v61, %v50
  %v68 = vadd.s32 %v61, %v51
  %v69 = vadd.s32 %v61, %v52
  %v70 = vadd.s32 %v61, %v53
  %v71 = vadd.s32 %v61, %v54
  %v72 = vadd.s32 %v61, %v55
  %v73 = vadd.s32 %v61, %v56
  %v74 = vadd.s32 %v61, %v57
  %v75 = vadd.s32 %v61, %v58
  %v76 = vadd.s32 %v61, %v59
  %v77 = vadd.s32 %v61, %v60
  %s78 = smul.u32 0, 128
  %v79 = vlaneseq
  %v80 = vand.u32 %v79, 127
  %v81 = vstv %s78
  %v82 = vadd.s32 %v81, %v80
  %vm83 = vcmp.ne.s32.totalorder %v62, %v82
  %vm84 = vcmp.ne.s32.totalorder %v63, %v82
  %vm85 = vcmp.ne.s32.totalorder %v64, %v82
  %vm86 = vcmp.ne.s32.totalorder %v65, %v82
  %vm87 = vcmp.ne.s32.totalorder %v66, %v82
  %vm88 = vcmp.ne.s32.totalorder %v67, %v82
  %vm89 = vcmp.ne.s32.totalorder %v68, %v82
  %vm90 = vcmp.ne.s32.totalorder %v69, %v82
  %vm91 = vcmp.ne.s32.totalorder %v70, %v82
  %vm92 = vcmp.ne.s32.totalorder %v71, %v82
  %vm93 = vcmp.ne.s32.totalorder %v72, %v82
  %vm94 = vcmp.ne.s32.totalorder %v73, %v82
  %vm95 = vcmp.ne.s32.totalorder %v74, %v82
  %vm96 = vcmp.ne.s32.totalorder %v75, %v82
  %vm97 = vcmp.ne.s32.totalorder %v76, %v82
  %vm98 = vcmp.ne.s32.totalorder %v77, %v82
  %v99 = vld [vmem:[%s2] sm:$0xff]
  %v100 = vld [vmem:[%s2 + $0x8] sm:$0xff]
  %v101 = vld [vmem:[%s2 + $0x10] sm:$0xff]
  %v102 = vld [vmem:[%s2 + $0x18] sm:$0xff]
  %v103 = vld [vmem:[%s2 + $0x20] sm:$0xff]
  %v104 = vld [vmem:[%s2 + $0x28] sm:$0xff]
  %v105 = vld [vmem:[%s2 + $0x30] sm:$0xff]
  %v106 = vld [vmem:[%s2 + $0x38] sm:$0xff]
  %v107 = vld [vmem:[%s2 + $0x40] sm:$0xff]
  %v108 = vld [vmem:[%s2 + $0x48] sm:$0xff]
  %v109 = vld [vmem:[%s2 + $0x50] sm:$0xff]
  %v110 = vld [vmem:[%s2 + $0x58] sm:$0xff]
  %v111 = vld [vmem:[%s2 + $0x60] sm:$0xff]
  %v112 = vld [vmem:[%s2 + $0x68] sm:$0xff]
  %v113 = vld [vmem:[%s2 + $0x70] sm:$0xff]
  %v114 = vld [vmem:[%s2 + $0x78] sm:$0xff]
  %v115 = vld [vmem:[%s3] sm:$0xff]
  %v116 = vld [vmem:[%s4] sm:$0xff]
  %v117 = vld [vmem:[%s4 + $0x8] sm:$0xff]
  %v118 = vld [vmem:[%s4 + $0x10] sm:$0xff]
  %v119 = vld [vmem:[%s4 + $0x18] sm:$0xff]
  %v120 = vld [vmem:[%s4 + $0x20] sm:$0xff]
  %v121 = vld [vmem:[%s4 + $0x28] sm:$0xff]
  %v122 = vld [vmem:[%s4 + $0x30] sm:$0xff]
  %v123 = vld [vmem:[%s4 + $0x38] sm:$0xff]
  %v124 = vld [vmem:[%s4 + $0x40] sm:$0xff]
  %v125 = vld [vmem:[%s4 + $0x48] sm:$0xff]
  %v126 = vld [vmem:[%s4 + $0x50] sm:$0xff]
  %v127 = vld [vmem:[%s4 + $0x58] sm:$0xff]
  %v128 = vld [vmem:[%s4 + $0x60] sm:$0xff]
  %v129 = vld [vmem:[%s4 + $0x68] sm:$0xff]
  %v130 = vld [vmem:[%s4 + $0x70] sm:$0xff]
  %v131 = vld [vmem:[%s4 + $0x78] sm:$0xff]
  %133 = vset.pattern.permute.xlu0 0
  %134 = vperm.xlu0 %133, %v116
  %v135 = vpop.permute.xlu0 %134
  %138 = vset.pattern.permute.xlu0 0
  %139 = vperm.xlu0 %138, %v117
  %v140 = vpop.permute.xlu0 %139
  %143 = vset.pattern.permute.xlu0 0
  %144 = vperm.xlu0 %143, %v118
  %v145 = vpop.permute.xlu0 %144
  %148 = vset.pattern.permute.xlu0 0
  %149 = vperm.xlu0 %148, %v119
  %v150 = vpop.permute.xlu0 %149
  %153 = vset.pattern.permute.xlu0 0
  %154 = vperm.xlu0 %153, %v120
  %v155 = vpop.permute.xlu0 %154
  %158 = vset.pattern.permute.xlu0 0
  %159 = vperm.xlu0 %158, %v121
  %v160 = vpop.permute.xlu0 %159
  %163 = vset.pattern.permute.xlu0 0
  %164 = vperm.xlu0 %163, %v122
  %v165 = vpop.permute.xlu0 %164
  %168 = vset.pattern.permute.xlu0 0
  %169 = vperm.xlu0 %168, %v123
  %v170 = vpop.permute.xlu0 %169
  %173 = vset.pattern.permute.xlu0 0
  %174 = vperm.xlu0 %173, %v124
  %v175 = vpop.permute.xlu0 %174
  %178 = vset.pattern.permute.xlu0 0
  %179 = vperm.xlu0 %178, %v125
  %v180 = vpop.permute.xlu0 %179
  %183 = vset.pattern.permute.xlu0 0
  %184 = vperm.xlu0 %183, %v126
  %v185 = vpop.permute.xlu0 %184
  %188 = vset.pattern.permute.xlu0 0
  %189 = vperm.xlu0 %188, %v127
  %v190 = vpop.permute.xlu0 %189
  %193 = vset.pattern.permute.xlu0 0
  %194 = vperm.xlu0 %193, %v128
  %v195 = vpop.permute.xlu0 %194
  %198 = vset.pattern.permute.xlu0 0
  %199 = vperm.xlu0 %198, %v129
  %v200 = vpop.permute.xlu0 %199
  %203 = vset.pattern.permute.xlu0 0
  %204 = vperm.xlu0 %203, %v130
  %v205 = vpop.permute.xlu0 %204
  %208 = vset.pattern.permute.xlu0 0
  %209 = vperm.xlu0 %208, %v131
  %v210 = vpop.permute.xlu0 %209
  %vm212 = vcmask 64512
  %v214 = vsel %vm212, %v99, 0
  %v217 = vsel %vm212, %v100, 0
  %v220 = vsel %vm212, %v101, 0
  %v223 = vsel %vm212, %v102, 0
  %v226 = vsel %vm212, %v103, 0
  %v229 = vsel %vm212, %v104, 0
  %v232 = vsel %vm212, %v105, 0
  %v235 = vsel %vm212, %v106, 0
  %v238 = vsel %vm212, %v107, 0
  %v241 = vsel %vm212, %v108, 0
  %v244 = vsel %vm212, %v109, 0
  %v247 = vsel %vm212, %v110, 0
  %v250 = vsel %vm212, %v111, 0
  %v253 = vsel %vm212, %v112, 0
  %v256 = vsel %vm212, %v113, 0
  %v259 = vsel %vm212, %v114, 0
  %261 = vmatprep.subr.mxu0 0.0
  %262 = vmatpush1.msra.mxu0 0.0
  %263 = vmatprep.subr.mxu0 0.0
  %264 = vmatpush1.msra.mxu0 0.0
  %265 = vmatprep.subr.mxu0 0.0
  %266 = vmatpush1.msra.mxu0 0.0
  %267 = vmatprep.subr.mxu0 0.0
  %268 = vmatpush1.msra.mxu0 0.0
  %269 = vmatprep.subr.mxu0 0.0
  %270 = vmatpush1.msra.mxu0 0.0
  %271 = vmatprep.subr.mxu0 0.0
  %272 = vmatpush1.msra.mxu0 0.0
  %273 = vmatprep.subr.mxu0 0.0
  %274 = vmatpush1.msra.mxu0 0.0
  %275 = vmatprep.subr.mxu0 0.0
  %276 = vmatpush1.msra.mxu0 0.0
  %277 = vmatprep.subr.mxu0 0.0
  %278 = vmatpush1.msra.mxu0 0.0
  %279 = vmatprep.subr.mxu0 0.0
  %280 = vmatpush1.msra.mxu0 0.0
  %281 = vmatprep.subr.mxu0 0.0
  %282 = vmatpush1.msra.mxu0 0.0
  %283 = vmatprep.subr.mxu0 0.0
  %284 = vmatpush1.msra.mxu0 0.0
  %285 = vmatprep.subr.mxu0 0.0
  %286 = vmatpush1.msra.mxu0 0.0
  %287 = vmatprep.subr.mxu0 0.0
  %288 = vmatpush1.msra.mxu0 0.0
  %289 = vmatprep.subr.mxu0 0.0
  %290 = vmatpush1.msra.mxu0 0.0
  %291 = vmatprep.subr.mxu0 0.0
  %292 = vmatpush1.msra.mxu0 %v115
  %293 = vmatprep.subr.mxu0 0.0
  %294 = vmatpush2.msra.mxu0 0.0
  %295 = vmatprep.subr.mxu0 0.0
  %296 = vmatpush2.msra.mxu0 0.0
  %297 = vmatprep.subr.mxu0 0.0
  %298 = vmatpush2.msra.mxu0 0.0
  %299 = vmatprep.subr.mxu0 0.0
  %300 = vmatpush2.msra.mxu0 0.0
  %301 = vmatprep.subr.mxu0 0.0
  %302 = vmatpush2.msra.mxu0 0.0
  %303 = vmatprep.subr.mxu0 0.0
  %304 = vmatpush2.msra.mxu0 0.0
  %305 = vmatprep.subr.mxu0 0.0
  %306 = vmatpush2.msra.mxu0 0.0
  %307 = vmatprep.subr.mxu0 0.0
  %308 = vmatpush2.msra.mxu0 0.0
  %309 = vmatprep.subr.mxu0 0.0
  %310 = vmatpush2.msra.mxu0 0.0
  %311 = vmatprep.subr.mxu0 0.0
  %312 = vmatpush2.msra.mxu0 0.0
  %313 = vmatprep.subr.mxu0 0.0
  %314 = vmatpush2.msra.mxu0 0.0
  %315 = vmatprep.subr.mxu0 0.0
  %316 = vmatpush2.msra.mxu0 0.0
  %317 = vmatprep.subr.mxu0 0.0
  %318 = vmatpush2.msra.mxu0 0.0
  %319 = vmatprep.subr.mxu0 0.0
  %320 = vmatpush2.msra.mxu0 0.0
  %321 = vmatprep.subr.mxu0 0.0
  %322 = vmatpush2.msra.mxu0 0.0
  %323 = vmatprep.subr.mxu0 0.0
  %324 = vmatpush2.msra.mxu0 0.0
  %325 = vmatprep.mubr.f32.mxu0 0.0
  %326 = vmatmul.mubr.f32.gmra.mxu0 %v214
  %v327 = vpop.f32.mrf.mxu0
  %v328 = vadd.f32 %v135, %v327
  %v329 = vpop.f32.mrf.mxu0
  %330 = vmatprep.mubr.f32.mxu0 0.0
  %331 = vmatmul.mubr.f32.gmra.mxu0 %v217
  %v332 = vpop.f32.mrf.mxu0
  %v333 = vadd.f32 %v140, %v332
  %v334 = vpop.f32.mrf.mxu0
  %335 = vmatprep.mubr.f32.mxu0 0.0
  %336 = vmatmul.mubr.f32.gmra.mxu0 %v220
  %v337 = vpop.f32.mrf.mxu0
  %v338 = vadd.f32 %v145, %v337
  %v339 = vpop.f32.mrf.mxu0
  %340 = vmatprep.mubr.f32.mxu0 0.0
  %341 = vmatmul.mubr.f32.gmra.mxu0 %v223
  %v342 = vpop.f32.mrf.mxu0
  %v343 = vadd.f32 %v150, %v342
  %v344 = vpop.f32.mrf.mxu0
  %345 = vmatprep.mubr.f32.mxu0 0.0
  %346 = vmatmul.mubr.f32.gmra.mxu0 %v226
  %v347 = vpop.f32.mrf.mxu0
  %v348 = vadd.f32 %v155, %v347
  %v349 = vpop.f32.mrf.mxu0
  %350 = vmatprep.mubr.f32.mxu0 0.0
  %351 = vmatmul.mubr.f32.gmra.mxu0 %v229
  %v352 = vpop.f32.mrf.mxu0
  %v353 = vadd.f32 %v160, %v352
  %v354 = vpop.f32.mrf.mxu0
  %355 = vmatprep.mubr.f32.mxu0 0.0
  %356 = vmatmul.mubr.f32.gmra.mxu0 %v232
  %v357 = vpop.f32.mrf.mxu0
  %v358 = vadd.f32 %v165, %v357
  %v359 = vpop.f32.mrf.mxu0
  %360 = vmatprep.mubr.f32.mxu0 0.0
  %361 = vmatmul.mubr.f32.gmra.mxu0 %v235
  %v362 = vpop.f32.mrf.mxu0
  %v363 = vadd.f32 %v170, %v362
  %v364 = vpop.f32.mrf.mxu0
  %365 = vmatprep.mubr.f32.mxu0 0.0
  %366 = vmatmul.mubr.f32.gmra.mxu0 %v238
  %v367 = vpop.f32.mrf.mxu0
  %v368 = vadd.f32 %v175, %v367
  %v369 = vpop.f32.mrf.mxu0
  %370 = vmatprep.mubr.f32.mxu0 0.0
  %371 = vmatmul.mubr.f32.gmra.mxu0 %v241
  %v372 = vpop.f32.mrf.mxu0
  %v373 = vadd.f32 %v180, %v372
  %v374 = vpop.f32.mrf.mxu0
  %375 = vmatprep.mubr.f32.mxu0 0.0
  %376 = vmatmul.mubr.f32.gmra.mxu0 %v244
  %v377 = vpop.f32.mrf.mxu0
  %v378 = vadd.f32 %v185, %v377
  %v379 = vpop.f32.mrf.mxu0
  %380 = vmatprep.mubr.f32.mxu0 0.0
  %381 = vmatmul.mubr.f32.gmra.mxu0 %v247
  %v382 = vpop.f32.mrf.mxu0
  %v383 = vadd.f32 %v190, %v382
  %v384 = vpop.f32.mrf.mxu0
  %385 = vmatprep.mubr.f32.mxu0 0.0
  %386 = vmatmul.mubr.f32.gmra.mxu0 %v250
  %v387 = vpop.f32.mrf.mxu0
  %v388 = vadd.f32 %v195, %v387
  %v389 = vpop.f32.mrf.mxu0
  %390 = vmatprep.mubr.f32.mxu0 0.0
  %391 = vmatmul.mubr.f32.gmra.mxu0 %v253
  %v392 = vpop.f32.mrf.mxu0
  %v393 = vadd.f32 %v200, %v392
  %v394 = vpop.f32.mrf.mxu0
  %395 = vmatprep.mubr.f32.mxu0 0.0
  %396 = vmatmul.mubr.f32.gmra.mxu0 %v256
  %v397 = vpop.f32.mrf.mxu0
  %v398 = vadd.f32 %v205, %v397
  %v399 = vpop.f32.mrf.mxu0
  %400 = vmatprep.mubr.f32.mxu0 0.0
  %401 = vmatmul.mubr.f32.gmra.mxu0 %v259
  %v402 = vpop.f32.mrf.mxu0
  %v403 = vadd.f32 %v210, %v402
  %v404 = vpop.f32.mrf.mxu0
  %405 = vdwg.mxu0
  %v406 = vld [vmem:[%s5] sm:$0x1]
  %v408 = vlaneseq
  %v409 = vshrl.u32 %v408, 7
  %v410 = vsub.s32 0, %v409
  %v411 = vrot.slane %v406, %v410
  %v413 = vadd.f32 %v328, %v411
  %v414 = vadd.f32 %v333, %v411
  %v415 = vadd.f32 %v338, %v411
  %v416 = vadd.f32 %v343, %v411
  %v417 = vadd.f32 %v348, %v411
  %v418 = vadd.f32 %v353, %v411
  %v419 = vadd.f32 %v358, %v411
  %v420 = vadd.f32 %v363, %v411
  %v421 = vadd.f32 %v368, %v411
  %v422 = vadd.f32 %v373, %v411
  %v423 = vadd.f32 %v378, %v411
  %v424 = vadd.f32 %v383, %v411
  %v425 = vadd.f32 %v388, %v411
  %v426 = vadd.f32 %v393, %v411
  %v427 = vadd.f32 %v398, %v411
  %v428 = vadd.f32 %v403, %v411
  %v429 = vmin.f32 %v413, 0.0
  %v430 = vmin.f32 %v414, 0.0
  %v431 = vmin.f32 %v415, 0.0
  %v432 = vmin.f32 %v416, 0.0
  %v433 = vmin.f32 %v417, 0.0
  %v434 = vmin.f32 %v418, 0.0
  %v435 = vmin.f32 %v419, 0.0
  %v436 = vmin.f32 %v420, 0.0
  %v437 = vmin.f32 %v421, 0.0
  %v438 = vmin.f32 %v422, 0.0
  %v439 = vmin.f32 %v423, 0.0
  %v440 = vmin.f32 %v424, 0.0
  %v441 = vmin.f32 %v425, 0.0
  %v442 = vmin.f32 %v426, 0.0
  %v443 = vmin.f32 %v427, 0.0
  %v444 = vmin.f32 %v428, 0.0
  %v445 = vmul.f32 %v429, 1.442695
  %v446 = vpow.pop %v445
  %v447 = vmul.f32 %v430, 1.442695
  %v448 = vpow.pop %v447
  %v449 = vmul.f32 %v431, 1.442695
  %v450 = vpow.pop %v449
  %v451 = vmul.f32 %v432, 1.442695
  %v452 = vpow.pop %v451
  %v453 = vmul.f32 %v433, 1.442695
  %v454 = vpow.pop %v453
  %v455 = vmul.f32 %v434, 1.442695
  %v456 = vpow.pop %v455
  %v457 = vmul.f32 %v435, 1.442695
  %v458 = vpow.pop %v457
  %v459 = vmul.f32 %v436, 1.442695
  %v460 = vpow.pop %v459
  %v461 = vmul.f32 %v437, 1.442695
  %v462 = vpow.pop %v461
  %v463 = vmul.f32 %v438, 1.442695
  %v464 = vpow.pop %v463
  %v465 = vmul.f32 %v439, 1.442695
  %v466 = vpow.pop %v465
  %v467 = vmul.f32 %v440, 1.442695
  %v468 = vpow.pop %v467
  %v469 = vmul.f32 %v441, 1.442695
  %v470 = vpow.pop %v469
  %v471 = vmul.f32 %v442, 1.442695
  %v472 = vpow.pop %v471
  %v473 = vmul.f32 %v443, 1.442695
  %v474 = vpow.pop %v473
  %v475 = vmul.f32 %v444, 1.442695
  %v476 = vpow.pop %v475
  %v477 = vld [vmem:[%s0] sm:$0xff]
  %v478 = vld [vmem:[%s0 + $0x8] sm:$0xff]
  %v479 = vld [vmem:[%s0 + $0x10] sm:$0xff]
  %v480 = vld [vmem:[%s0 + $0x18] sm:$0xff]
  %v481 = vld [vmem:[%s0 + $0x20] sm:$0xff]
  %v482 = vld [vmem:[%s0 + $0x28] sm:$0xff]
  %v483 = vld [vmem:[%s0 + $0x30] sm:$0xff]
  %v484 = vld [vmem:[%s0 + $0x38] sm:$0xff]
  %v485 = vld [vmem:[%s0 + $0x40] sm:$0xff]
  %v486 = vld [vmem:[%s0 + $0x48] sm:$0xff]
  %v487 = vld [vmem:[%s0 + $0x50] sm:$0xff]
  %v488 = vld [vmem:[%s0 + $0x58] sm:$0xff]
  %v489 = vld [vmem:[%s0 + $0x60] sm:$0xff]
  %v490 = vld [vmem:[%s0 + $0x68] sm:$0xff]
  %v491 = vld [vmem:[%s0 + $0x70] sm:$0xff]
  %v492 = vld [vmem:[%s0 + $0x78] sm:$0xff]
  %v493 = vld [vmem:[%s1] sm:$0x1]
  %494 = vset.pattern.permute.xlu0 0
  %495 = vperm.xlu0 %494, %v477
  %v496 = vpop.permute.xlu0 %495
  %497 = vset.pattern.permute.xlu0 0
  %498 = vperm.xlu0 %497, %v478
  %v499 = vpop.permute.xlu0 %498
  %500 = vset.pattern.permute.xlu0 0
  %501 = vperm.xlu0 %500, %v479
  %v502 = vpop.permute.xlu0 %501
  %503 = vset.pattern.permute.xlu0 0
  %504 = vperm.xlu0 %503, %v480
  %v505 = vpop.permute.xlu0 %504
  %506 = vset.pattern.permute.xlu0 0
  %507 = vperm.xlu0 %506, %v481
  %v508 = vpop.permute.xlu0 %507
  %509 = vset.pattern.permute.xlu0 0
  %510 = vperm.xlu0 %509, %v482
  %v511 = vpop.permute.xlu0 %510
  %512 = vset.pattern.permute.xlu0 0
  %513 = vperm.xlu0 %512, %v483
  %v514 = vpop.permute.xlu0 %513
  %515 = vset.pattern.permute.xlu0 0
  %516 = vperm.xlu0 %515, %v484
  %v517 = vpop.permute.xlu0 %516
  %518 = vset.pattern.permute.xlu0 0
  %519 = vperm.xlu0 %518, %v485
  %v520 = vpop.permute.xlu0 %519
  %521 = vset.pattern.permute.xlu0 0
  %522 = vperm.xlu0 %521, %v486
  %v523 = vpop.permute.xlu0 %522
  %524 = vset.pattern.permute.xlu0 0
  %525 = vperm.xlu0 %524, %v487
  %v526 = vpop.permute.xlu0 %525
  %527 = vset.pattern.permute.xlu0 0
  %528 = vperm.xlu0 %527, %v488
  %v529 = vpop.permute.xlu0 %528
  %530 = vset.pattern.permute.xlu0 0
  %531 = vperm.xlu0 %530, %v489
  %v532 = vpop.permute.xlu0 %531
  %533 = vset.pattern.permute.xlu0 0
  %534 = vperm.xlu0 %533, %v490
  %v535 = vpop.permute.xlu0 %534
  %536 = vset.pattern.permute.xlu0 0
  %537 = vperm.xlu0 %536, %v491
  %v538 = vpop.permute.xlu0 %537
  %539 = vset.pattern.permute.xlu0 0
  %540 = vperm.xlu0 %539, %v492
  %v541 = vpop.permute.xlu0 %540
  %v542 = vlaneseq
  %v543 = vshrl.u32 %v542, 7
  %v544 = vsub.s32 0, %v543
  %v545 = vrot.slane %v493, %v544
  %vm546 = vcmp.eq.s32.totalorder %v496, %v545
  %vm547 = vcmp.eq.s32.totalorder %v499, %v545
  %vm548 = vcmp.eq.s32.totalorder %v502, %v545
  %vm549 = vcmp.eq.s32.totalorder %v505, %v545
  %vm550 = vcmp.eq.s32.totalorder %v508, %v545
  %vm551 = vcmp.eq.s32.totalorder %v511, %v545
  %vm552 = vcmp.eq.s32.totalorder %v514, %v545
  %vm553 = vcmp.eq.s32.totalorder %v517, %v545
  %vm554 = vcmp.eq.s32.totalorder %v520, %v545
  %vm555 = vcmp.eq.s32.totalorder %v523, %v545
  %vm556 = vcmp.eq.s32.totalorder %v526, %v545
  %vm557 = vcmp.eq.s32.totalorder %v529, %v545
  %vm558 = vcmp.eq.s32.totalorder %v532, %v545
  %vm559 = vcmp.eq.s32.totalorder %v535, %v545
  %vm560 = vcmp.eq.s32.totalorder %v538, %v545
  %vm561 = vcmp.eq.s32.totalorder %v541, %v545
  %vm562 = vmand %vm546, %vm83
  %vm563 = vmand %vm547, %vm84
  %vm564 = vmand %vm548, %vm85
  %vm565 = vmand %vm549, %vm86
  %vm566 = vmand %vm550, %vm87
  %vm567 = vmand %vm551, %vm88
  %vm568 = vmand %vm552, %vm89
  %vm569 = vmand %vm553, %vm90
  %vm570 = vmand %vm554, %vm91
  %vm571 = vmand %vm555, %vm92
  %vm572 = vmand %vm556, %vm93
  %vm573 = vmand %vm557, %vm94
  %vm574 = vmand %vm558, %vm95
  %vm575 = vmand %vm559, %vm96
  %vm576 = vmand %vm560, %vm97
  %vm577 = vmand %vm561, %vm98
  %v578 = vsel %vm562, %v446, 0.0
  %v579 = vsel %vm563, %v448, 0.0
  %v580 = vsel %vm564, %v450, 0.0
  %v581 = vsel %vm565, %v452, 0.0
  %v582 = vsel %vm566, %v454, 0.0
  %v583 = vsel %vm567, %v456, 0.0
  %v584 = vsel %vm568, %v458, 0.0
  %v585 = vsel %vm569, %v460, 0.0
  %v586 = vsel %vm570, %v462, 0.0
  %v587 = vsel %vm571, %v464, 0.0
  %v588 = vsel %vm572, %v466, 0.0
  %v589 = vsel %vm573, %v468, 0.0
  %v590 = vsel %vm574, %v470, 0.0
  %v591 = vsel %vm575, %v472, 0.0
  %v592 = vsel %vm576, %v474, 0.0
  %v593 = vsel %vm577, %v476, 0.0
  %v594 = vld [vmem:[#allocation2] sm:$0xff]
  %v595 = vld [vmem:[#allocation2 + $0x8] sm:$0xff]
  %v596 = vld [vmem:[#allocation2 + $0x10] sm:$0xff]
  %v597 = vld [vmem:[#allocation2 + $0x18] sm:$0xff]
  %v598 = vld [vmem:[#allocation2 + $0x20] sm:$0xff]
  %v599 = vld [vmem:[#allocation2 + $0x28] sm:$0xff]
  %v600 = vld [vmem:[#allocation2 + $0x30] sm:$0xff]
  %v601 = vld [vmem:[#allocation2 + $0x38] sm:$0xff]
  %v602 = vld [vmem:[#allocation2 + $0x40] sm:$0xff]
  %v603 = vld [vmem:[#allocation2 + $0x48] sm:$0xff]
  %v604 = vld [vmem:[#allocation2 + $0x50] sm:$0xff]
  %v605 = vld [vmem:[#allocation2 + $0x58] sm:$0xff]
  %v606 = vld [vmem:[#allocation2 + $0x60] sm:$0xff]
  %v607 = vld [vmem:[#allocation2 + $0x68] sm:$0xff]
  %v608 = vld [vmem:[#allocation2 + $0x70] sm:$0xff]
  %v609 = vld [vmem:[#allocation2 + $0x78] sm:$0xff]
  %v610 = vadd.f32 %v594, %v578
  %v611 = vadd.f32 %v595, %v579
  %v612 = vadd.f32 %v596, %v580
  %v613 = vadd.f32 %v597, %v581
  %v614 = vadd.f32 %v598, %v582
  %v615 = vadd.f32 %v599, %v583
  %v616 = vadd.f32 %v600, %v584
  %v617 = vadd.f32 %v601, %v585
  %v618 = vadd.f32 %v602, %v586
  %v619 = vadd.f32 %v603, %v587
  %v620 = vadd.f32 %v604, %v588
  %v621 = vadd.f32 %v605, %v589
  %v622 = vadd.f32 %v606, %v590
  %v623 = vadd.f32 %v607, %v591
  %v624 = vadd.f32 %v608, %v592
  %v625 = vadd.f32 %v609, %v593
  %626 = vst [vmem:[#allocation2] sm:$0xff] %v610
  %627 = vst [vmem:[#allocation2 + $0x8] sm:$0xff] %v611
  %628 = vst [vmem:[#allocation2 + $0x10] sm:$0xff] %v612
  %629 = vst [vmem:[#allocation2 + $0x18] sm:$0xff] %v613
  %630 = vst [vmem:[#allocation2 + $0x20] sm:$0xff] %v614
  %631 = vst [vmem:[#allocation2 + $0x28] sm:$0xff] %v615
  %632 = vst [vmem:[#allocation2 + $0x30] sm:$0xff] %v616
  %633 = vst [vmem:[#allocation2 + $0x38] sm:$0xff] %v617
  %634 = vst [vmem:[#allocation2 + $0x40] sm:$0xff] %v618
  %635 = vst [vmem:[#allocation2 + $0x48] sm:$0xff] %v619
  %636 = vst [vmem:[#allocation2 + $0x50] sm:$0xff] %v620
  %637 = vst [vmem:[#allocation2 + $0x58] sm:$0xff] %v621
  %638 = vst [vmem:[#allocation2 + $0x60] sm:$0xff] %v622
  %639 = vst [vmem:[#allocation2 + $0x68] sm:$0xff] %v623
  %640 = vst [vmem:[#allocation2 + $0x70] sm:$0xff] %v624
  %641 = vst [vmem:[#allocation2 + $0x78] sm:$0xff] %v625
  // Predicated region
  $region30: #{tpu_custom_call.1} parent=0 // pred_check
    %p642 = pneg %p23
  $region31: #{tpu_custom_call.1} parent=0 // pred_check_branch
    %644 = sbr.rel (%p642) target = $region33
  $region32: #{tpu_custom_call.1} parent=0 // pred_region
    %v645 = vld [vmem:[#allocation2] sm:$0xff]
    %v646 = vld [vmem:[#allocation2 + $0x8] sm:$0xff]
    %v647 = vld [vmem:[#allocation2 + $0x10] sm:$0xff]
    %v648 = vld [vmem:[#allocation2 + $0x18] sm:$0xff]
    %v649 = vld [vmem:[#allocation2 + $0x20] sm:$0xff]
    %v650 = vld [vmem:[#allocation2 + $0x28] sm:$0xff]
    %v651 = vld [vmem:[#allocation2 + $0x30] sm:$0xff]
    %v652 = vld [vmem:[#allocation2 + $0x38] sm:$0xff]
    %v653 = vld [vmem:[#allocation2 + $0x40] sm:$0xff]
    %v654 = vld [vmem:[#allocation2 + $0x48] sm:$0xff]
    %v655 = vld [vmem:[#allocation2 + $0x50] sm:$0xff]
    %v656 = vld [vmem:[#allocation2 + $0x58] sm:$0xff]
    %v657 = vld [vmem:[#allocation2 + $0x60] sm:$0xff]
    %v658 = vld [vmem:[#allocation2 + $0x68] sm:$0xff]
    %v659 = vld [vmem:[#allocation2 + $0x70] sm:$0xff]
    %v660 = vld [vmem:[#allocation2 + $0x78] sm:$0xff]
    %661 = vadd.xlane.f32.xlu0 %v645
    %v662 = vpop.xlane.xlu0 %661
    %663 = vadd.xlane.f32.xlu0 %v646
    %v664 = vpop.xlane.xlu0 %663
    %665 = vadd.xlane.f32.xlu0 %v647
    %v666 = vpop.xlane.xlu0 %665
    %667 = vadd.xlane.f32.xlu0 %v648
    %v668 = vpop.xlane.xlu0 %667
    %669 = vadd.xlane.f32.xlu0 %v649
    %v670 = vpop.xlane.xlu0 %669
    %671 = vadd.xlane.f32.xlu0 %v650
    %v672 = vpop.xlane.xlu0 %671
    %673 = vadd.xlane.f32.xlu0 %v651
    %v674 = vpop.xlane.xlu0 %673
    %675 = vadd.xlane.f32.xlu0 %v652
    %v676 = vpop.xlane.xlu0 %675
    %677 = vadd.xlane.f32.xlu0 %v653
    %v678 = vpop.xlane.xlu0 %677
    %679 = vadd.xlane.f32.xlu0 %v654
    %v680 = vpop.xlane.xlu0 %679
    %681 = vadd.xlane.f32.xlu0 %v655
    %v682 = vpop.xlane.xlu0 %681
    %683 = vadd.xlane.f32.xlu0 %v656
    %v684 = vpop.xlane.xlu0 %683
    %685 = vadd.xlane.f32.xlu0 %v657
    %v686 = vpop.xlane.xlu0 %685
    %687 = vadd.xlane.f32.xlu0 %v658
    %v688 = vpop.xlane.xlu0 %687
    %689 = vadd.xlane.f32.xlu0 %v659
    %v690 = vpop.xlane.xlu0 %689
    %691 = vadd.xlane.f32.xlu0 %v660
    %v692 = vpop.xlane.xlu0 %691
    %vm693 = vcmp.lt.s32.totalorder %v62, 16
    %vm694 = vcmp.lt.s32.totalorder %v63, 16
    %vm695 = vcmp.lt.s32.totalorder %v64, 16
    %vm696 = vcmp.lt.s32.totalorder %v65, 16
    %vm697 = vcmp.lt.s32.totalorder %v66, 16
    %vm698 = vcmp.lt.s32.totalorder %v67, 16
    %vm699 = vcmp.lt.s32.totalorder %v68, 16
    %vm700 = vcmp.lt.s32.totalorder %v69, 16
    %vm701 = vcmp.lt.s32.totalorder %v70, 16
    %vm702 = vcmp.lt.s32.totalorder %v71, 16
    %vm703 = vcmp.lt.s32.totalorder %v72, 16
    %vm704 = vcmp.lt.s32.totalorder %v73, 16
    %vm705 = vcmp.lt.s32.totalorder %v74, 16
    %vm706 = vcmp.lt.s32.totalorder %v75, 16
    %vm707 = vcmp.lt.s32.totalorder %v76, 16
    %vm708 = vcmp.lt.s32.totalorder %v77, 16
    %v709 = vrcp.pop %v662
    %v710 = vmul.f32 1.0, %v709
    %v711 = vrcp.pop %v664
    %v712 = vmul.f32 1.0, %v711
    %v713 = vrcp.pop %v666
    %v714 = vmul.f32 1.0, %v713
    %v715 = vrcp.pop %v668
    %v716 = vmul.f32 1.0, %v715
    %v717 = vrcp.pop %v670
    %v718 = vmul.f32 1.0, %v717
    %v719 = vrcp.pop %v672
    %v720 = vmul.f32 1.0, %v719
    %v721 = vrcp.pop %v674
    %v722 = vmul.f32 1.0, %v721
    %v723 = vrcp.pop %v676
    %v724 = vmul.f32 1.0, %v723
    %v725 = vrcp.pop %v678
    %v726 = vmul.f32 1.0, %v725
    %v727 = vrcp.pop %v680
    %v728 = vmul.f32 1.0, %v727
    %v729 = vrcp.pop %v682
    %v730 = vmul.f32 1.0, %v729
    %v731 = vrcp.pop %v684
    %v732 = vmul.f32 1.0, %v731
    %v733 = vrcp.pop %v686
    %v734 = vmul.f32 1.0, %v733
    %v735 = vrcp.pop %v688
    %v736 = vmul.f32 1.0, %v735
    %v737 = vrcp.pop %v690
    %v738 = vmul.f32 1.0, %v737
    %v739 = vrcp.pop %v692
    %v740 = vmul.f32 1.0, %v739
    %v741 = vsel %vm693, %v710, 0.0
    %v742 = vsel %vm694, %v712, 0.0
    %v743 = vsel %vm695, %v714, 0.0
    %v744 = vsel %vm696, %v716, 0.0
    %v745 = vsel %vm697, %v718, 0.0
    %v746 = vsel %vm698, %v720, 0.0
    %v747 = vsel %vm699, %v722, 0.0
    %v748 = vsel %vm700, %v724, 0.0
    %v749 = vsel %vm701, %v726, 0.0
    %v750 = vsel %vm702, %v728, 0.0
    %v751 = vsel %vm703, %v730, 0.0
    %v752 = vsel %vm704, %v732, 0.0
    %v753 = vsel %vm705, %v734, 0.0
    %v754 = vsel %vm706, %v736, 0.0
    %v755 = vsel %vm707, %v738, 0.0
    %v756 = vsel %vm708, %v740, 0.0
    %vm757 = vcmask 7168
    %758 = vst.msk [vmem:[%s6] sm:$0xff] %vm757, %v741
    %759 = vst.msk [vmem:[%s6 + $0x8] sm:$0xff] %vm757, %v742
    %760 = vst.msk [vmem:[%s6 + $0x10] sm:$0xff] %vm757, %v743
    %761 = vst.msk [vmem:[%s6 + $0x18] sm:$0xff] %vm757, %v744
    %762 = vst.msk [vmem:[%s6 + $0x20] sm:$0xff] %vm757, %v745
    %763 = vst.msk [vmem:[%s6 + $0x28] sm:$0xff] %vm757, %v746
    %764 = vst.msk [vmem:[%s6 + $0x30] sm:$0xff] %vm757, %v747
    %765 = vst.msk [vmem:[%s6 + $0x38] sm:$0xff] %vm757, %v748
    %766 = vst.msk [vmem:[%s6 + $0x40] sm:$0xff] %vm757, %v749
    %767 = vst.msk [vmem:[%s6 + $0x48] sm:$0xff] %vm757, %v750
    %768 = vst.msk [vmem:[%s6 + $0x50] sm:$0xff] %vm757, %v751
    %769 = vst.msk [vmem:[%s6 + $0x58] sm:$0xff] %vm757, %v752
    %770 = vst.msk [vmem:[%s6 + $0x60] sm:$0xff] %vm757, %v753
    %771 = vst.msk [vmem:[%s6 + $0x68] sm:$0xff] %vm757, %v754
    %772 = vst.msk [vmem:[%s6 + $0x70] sm:$0xff] %vm757, %v755
    %773 = vst.msk [vmem:[%s6 + $0x78] sm:$0xff] %vm757, %v756
  $region33: #{tpu_custom_call.1} parent=0 // pred_fallthru
    _
  // Predicated region
  $region34: #{tpu_custom_call.1} parent=0 // pred_check
    _
  $region35: #{tpu_custom_call.1} parent=0 // pred_check_branch
    %775 = sbr.rel (0) target = $region37
  $region36: #{tpu_custom_call.1} parent=0 // pred_region
    _
  $region37: #{tpu_custom_call.1} parent=0 // pred_fallthru
    _
  // Predicated region
  $region38: #{tpu_custom_call.1} parent=0 // pred_check
    _
  $region39: #{tpu_custom_call.1} parent=0 // pred_check_branch
    %777 = sbr.rel (0) target = $region41
  $region40: #{tpu_custom_call.1} parent=0 // pred_region
    _
  $region41: #{tpu_custom_call.1} parent=0 // pred_fallthru
    _

</llo_original>
